<compile_context>
chip_gen: v7x
topology: tpu7x:2x2x1
jax: 0.10.0
libtpu: 0.0.40
codegen_flags: <defaults>
</compile_context>

<pallas_src>
import jax
import jax.numpy as jnp
from jax.experimental import pallas as pl
from jax.experimental.pallas import tpu as pltpu


def _round_up(a, b):
    return (a + b - 1) // b * b


def height_head_kernel(x_ref, w_ref, b_ref, o_ref):
    """One row-tile of the fused (cls+reg) FC layer on the MXU."""
    # x_ref: (TM, D) bf16   w_ref: (D, OUT_PAD) bf16 (VMEM-resident)
    # b_ref: (1, OUT_PAD) f32   o_ref: (TM, OUT_PAD) f32
    acc = jnp.dot(x_ref[...], w_ref[...], preferred_element_type=jnp.float32)
    o_ref[...] = acc + b_ref[...]


def height_head_forward(x_nchw, w_cls, b_cls, w_reg, b_reg, *, tile_m=256):
    """HeightHead forward: flatten NCHW RoI features, fused cls+reg FC.

    Args:
      x_nchw: (N, C, H, W) float32
      w_cls:  (D, num_classes)     where D = C*H*W  (transposed vs. PyTorch)
      b_cls:  (1, num_classes)
      w_reg:  (D, 3*num_classes)   (or (D, 3) if reg_class_agnostic)
      b_reg:  (1, out_dim_reg)
      tile_m: row tile over RoIs (256 fits v5e/v6e/v7x VMEM at D=256*7*7).
    Returns:
      (cls_score, bbox_pred, tag_pred) with tag_pred == None.
    """
    n = x_nchw.shape[0]
    x2d = x_nchw.reshape(n, -1)                       # == x.view(x.size(0), -1)
    d = x2d.shape[1]
    num_classes = w_cls.shape[1]
    out_dim_reg = w_reg.shape[1]
    out_total = num_classes + out_dim_reg
    out_pad = _round_up(out_total, 128)               # lane-dense output width

    # Fuse cls + reg into one weight/bias, zero-pad output columns to 128-mult.
    w_fused = jnp.concatenate([w_cls, w_reg], axis=1)
    w_fused = jnp.pad(w_fused, ((0, 0), (0, out_pad - out_total)))
    b_fused = jnp.concatenate([b_cls, b_reg], axis=1)
    b_fused = jnp.pad(b_fused, ((0, 0), (0, out_pad - out_total)))

    # Pad N so every row tile is full (8-sublane aligned, remainder via padding).
    tm = min(tile_m, _round_up(n, 8))
    n_pad = _round_up(n, tm)
    x_pad = jnp.pad(x2d, ((0, n_pad - n), (0, 0)))

    # bf16 matmul operands (f32 accumulation inside the kernel).
    x_bf16 = x_pad.astype(jnp.bfloat16)
    w_bf16 = w_fused.astype(jnp.bfloat16)
    b_f32 = b_fused.astype(jnp.float32)

    grid = (n_pad // tm,)
    cost = pl.CostEstimate(
        flops=2 * n_pad * d * out_pad,
        transcendentals=0,
        bytes_accessed=(x_bf16.size * 2 + w_bf16.size * 2
                        + b_f32.size * 4 + n_pad * out_pad * 4),
    )

    fused_out = pl.pallas_call(
        height_head_kernel,
        out_shape=jax.ShapeDtypeStruct((n_pad, out_pad), jnp.float32),
        grid_spec=pltpu.PrefetchScalarGridSpec(
            num_scalar_prefetch=0,
            grid=grid,
            in_specs=[
                pl.BlockSpec((tm, d), lambda i: (i, 0)),        # streaming x tile
                pl.BlockSpec((d, out_pad), lambda i: (0, 0)),   # resident fused W
                pl.BlockSpec((1, out_pad), lambda i: (0, 0)),   # resident bias
            ],
            out_specs=pl.BlockSpec((tm, out_pad), lambda i: (i, 0)),
        ),
        compiler_params=pltpu.CompilerParams(
            dimension_semantics=("parallel",),       # shard row tiles across TCs
            vmem_limit_bytes=48 * 1024 * 1024,       # fits v7x's 64 MiB VMEM too
        ),
        cost_estimate=cost,
    )(x_bf16, w_bf16, b_f32)

    cls_score = fused_out[:n, :num_classes]
    bbox_pred = fused_out[:n, num_classes:out_total]
    tag_pred = None
    # TODO(synk): with_avg_pool=True and with_tag=True branches not implemented
    # (module defaults are False).
    return cls_score, bbox_pred, tag_pred


if __name__ == "__main__":
    # Module hyper-params (defaults), with a small channel count for the demo.
    N = 2                  # number of RoIs
    in_channels = 4        # small for the demo (module default is 256)
    roi_feat = 7           # roi_feat_size
    num_classes = 81
    reg_class_agnostic = False
    out_dim_reg = 3 if reg_class_agnostic else 3 * num_classes
    D = in_channels * roi_feat * roi_feat  # flattened feature dim

    key = jax.random.PRNGKey(0)
    kx, kc, kr = jax.random.split(key, 3)

    # Deterministic inputs / parameters (matching init_weights statistics).
    x = jax.random.normal(kx, (N, in_channels, roi_feat, roi_feat),
                          dtype=jnp.float32)
    # fc_cls: normal(0, 0.01) weights, zero bias. Stored transposed (D, out).
    w_cls = 0.01 * jax.random.normal(kc, (D, num_classes), dtype=jnp.float32)
    b_cls = jnp.zeros((1, num_classes), dtype=jnp.float32)
    # fc_reg: normal(0, 0.001) weights, zero bias.
    w_reg = 0.001 * jax.random.normal(kr, (D, out_dim_reg), dtype=jnp.float32)
    b_reg = jnp.zeros((1, out_dim_reg), dtype=jnp.float32)

    cls_score, bbox_pred, tag_pred = height_head_forward(
        x, w_cls, b_cls, w_reg, b_reg)
    jax.block_until_ready((cls_score, bbox_pred))

    # Reference with the same bf16 operand rounding + f32 accumulation.
    x2d = x.reshape(N, -1)
    xr = x2d.astype(jnp.bfloat16).astype(jnp.float32)
    wcr = w_cls.astype(jnp.bfloat16).astype(jnp.float32)
    wrr = w_reg.astype(jnp.bfloat16).astype(jnp.float32)
    ref_cls = jnp.dot(xr, wcr, precision=jax.lax.Precision.HIGHEST) + b_cls
    ref_reg = jnp.dot(xr, wrr, precision=jax.lax.Precision.HIGHEST) + b_reg

    assert cls_score.shape == (N, num_classes)
    assert bbox_pred.shape == (N, out_dim_reg)
    assert tag_pred is None
    assert jnp.allclose(cls_score, ref_cls, atol=1e-4, rtol=1e-3)
    assert jnp.allclose(bbox_pred, ref_reg, atol=1e-4, rtol=1e-3)

    print("KERNEL_OK")
</pallas_src>

<mosaic_0001>
module attributes {stable_mosaic.version = 11 : i64} {
  func.func @height_head_kernel(%arg0: i32, %arg1: memref<8x196xbf16, #tpu.memory_space<vmem>>, %arg2: memref<196x384xbf16, #tpu.memory_space<vmem>>, %arg3: memref<1x384xf32, #tpu.memory_space<vmem>>, %arg4: memref<8x384xf32, #tpu.memory_space<vmem>>) attributes {dimension_semantics = [#tpu.dimension_semantics<parallel>], iteration_bounds = array<i64: 1>, scalar_prefetch = 0 : i64, scratch_operands = 0 : i64, tpu.core_type = #tpu.core_type<tc>, window_params = [{transform_indices = @transform_0, window_bounds = array<i64: 8, 196>}, {pipeline_mode = #tpu.pipeline_mode<synchronous>, transform_indices = @transform_1, window_bounds = array<i64: 196, 384>}, {pipeline_mode = #tpu.pipeline_mode<synchronous>, transform_indices = @transform_2, window_bounds = array<i64: 1, 384>}, {transform_indices = @transform_3, window_bounds = array<i64: 8, 384>}]} {
    %c0 = arith.constant 0 : index
    %c0_0 = arith.constant 0 : index
    %0 = vector.load %arg1[%c0, %c0_0] : memref<8x196xbf16, #tpu.memory_space<vmem>>, vector<8x196xbf16>
    %c0_1 = arith.constant 0 : index
    %c0_2 = arith.constant 0 : index
    %1 = vector.load %arg2[%c0_1, %c0_2] : memref<196x384xbf16, #tpu.memory_space<vmem>>, vector<196x384xbf16>
    %cst = arith.constant dense<0.000000e+00> : vector<8x384xf32>
    %2 = tpu.matmul %0, %1, %cst {dimension_numbers = #tpu.dot_dimension_numbers<[1], [0], [0], [1], [0, 0, 1, 1], [], []>} : vector<8x196xbf16>, vector<196x384xbf16>, vector<8x384xf32> -> vector<8x384xf32>
    %c0_3 = arith.constant 0 : index
    %c0_4 = arith.constant 0 : index
    %3 = vector.load %arg3[%c0_3, %c0_4] : memref<1x384xf32, #tpu.memory_space<vmem>>, vector<1x384xf32>
    %4 = vector.broadcast %3 : vector<1x384xf32> to vector<8x384xf32>
    %5 = arith.addf %2, %4 : vector<8x384xf32>
    %c0_5 = arith.constant 0 : index
    %c0_6 = arith.constant 0 : index
    %6 = vector.load %arg4[%c0_5, %c0_6] : memref<8x384xf32, #tpu.memory_space<vmem>>, vector<8x384xf32>
    tpu.vector_store %arg4[%c0_5, %c0_6], %5 {strides = array<i32>} : memref<8x384xf32, #tpu.memory_space<vmem>>, vector<8x384xf32>,
    return
  }
  func.func @transform_0(%arg0: i32) -> (i32, i32) {
    %c0_i32 = arith.constant 0 : i32
    %c0_i32_0 = arith.constant 0 : i32
    return %arg0, %c0_i32 : i32, i32
  }
  func.func @transform_1(%arg0: i32) -> (i32, i32) {
    %c0_i32 = arith.constant 0 : i32
    %c0_i32_0 = arith.constant 0 : i32
    %c0_i32_1 = arith.constant 0 : i32
    return %c0_i32, %c0_i32_0 : i32, i32
  }
  func.func @transform_2(%arg0: i32) -> (i32, i32) {
    %c0_i32 = arith.constant 0 : i32
    %c0_i32_0 = arith.constant 0 : i32
    %c0_i32_1 = arith.constant 0 : i32
    return %c0_i32, %c0_i32_0 : i32, i32
  }
  func.func @transform_3(%arg0: i32) -> (i32, i32) {
    %c0_i32 = arith.constant 0 : i32
    %c0_i32_0 = arith.constant 0 : i32
    return %arg0, %c0_i32 : i32, i32
  }
}

</mosaic_0001>

<llo_original>
// kernel: tpu_custom_call.1
$region0: #{tpu_custom_call.1}
  #allocation0 [shape = 'u32[]', space=smem, size = 0x4, offset = 0x4, fixed_abs, tag = 'smem constant byte address 0x4 - core index']
  #allocation1 [shape = 'u32[144,128]{1,0:T(1,128)}', space=vmem, size = 0x12000, scoped, tag = 'internal scratch']
  %s0 = inlined_call_operand.hbm [shape: bf16[8,196], index: 0, kind: input, shape index: {}]
  %s1 = inlined_call_operand.hbm [shape: bf16[196,384], index: 1, kind: input, shape index: {}]
  %s2 = inlined_call_operand.vmem [shape: f32[1,384], index: 2, kind: input, shape index: {}]
  %s3 = inlined_call_operand.hbm [shape: f32[8,384], index: 3, kind: output, shape index: {}]
  %s4 = sld [smem:[#allocation0]]
  $region30: #{tpu_custom_call.1} parent=0
    _
  %s6 = ssub.s32 1, %s4
  %s7 = scalar_select 0, %s6, %s4
  $region1: #{tpu_custom_call.1} parent=0
    #allocation2 [shape = 'u8[4096]{0}', space=vmem, size = 0x1000, scoped, tag = 'input window, operand 0, single buffered']
    #allocation3 [shape = 's32[1]{0}', space=sflag, size = 0x4, scoped, tag = 'scoped memory for tpu_custom_call.1']
    #allocation4 [shape = 's32[1]{0}', space=sflag, size = 0x4, scoped, tag = 'scoped memory for tpu_custom_call.1']
    #allocation5 [shape = 'u8[153600]{0}', space=vmem, size = 0x25800, scoped, tag = 'input window, operand 1, single buffered']
    #allocation6 [shape = 's32[1]{0}', space=sflag, size = 0x4, scoped, tag = 'scoped memory for tpu_custom_call.1']
    #allocation7 [shape = 'u8[12288]{0}', space=vmem, size = 0x3000, scoped, tag = 'output window, operand 0, single buffered']
    %8 = vsyncpa [#allocation3], 0
    %9 = vsyncpa [#allocation6], 0
    %10 = vsyncpa [#allocation4], 0
    // Predicated region
    $region2: #{tpu_custom_call.1} parent=1 // pred_check
      _
    $region3: #{tpu_custom_call.1} parent=1 // pred_check_branch
      %12 = sbr.rel (0) target = $region5
    $region4: #{tpu_custom_call.1} parent=1 // pred_region
      %s14 = ssub.s32 128, 128
      %15 = vsyncadd [#allocation3], %s14
      %s17 = sshll.u32 [#allocation2], 4
      %s18 = int_to_ptr.vmem [resolvable:$true] %s17
      %20 = dma.hbm_to_vmem [thread:$0]  %s0, 128, %s18, [#allocation3]
    $region5: #{tpu_custom_call.1} parent=1 // pred_fallthru
      _
    // Predicated region
    $region6: #{tpu_custom_call.1} parent=1 // pred_check
      _
    $region7: #{tpu_custom_call.1} parent=1 // pred_check_branch
      %22 = sbr.rel (0) target = $region9
    $region8: #{tpu_custom_call.1} parent=1 // pred_region
      %s24 = ssub.s32 4800, 4800
      %25 = vsyncadd [#allocation6], %s24
      %s26 = sshll.u32 [#allocation5], 4
      %s27 = int_to_ptr.vmem [resolvable:$true] %s26
      %32 = dma.hbm_to_vmem [thread:$0]  %s1, 4800, %s27, [#allocation6], 192, 192, 12
    $region9: #{tpu_custom_call.1} parent=1 // pred_fallthru
      _
    // Predicated region
    $region10: #{tpu_custom_call.1} parent=1 // pred_check
      _
    $region11: #{tpu_custom_call.1} parent=1 // pred_check_branch
      %34 = sbr.rel (0) target = $region13
    $region12: #{tpu_custom_call.1} parent=1 // pred_region
      _
    $region13: #{tpu_custom_call.1} parent=1 // pred_fallthru
      _
    // Predicated region
    $region14: #{tpu_custom_call.1} parent=1 // pred_check
      _
    $region15: #{tpu_custom_call.1} parent=1 // pred_check_branch
      %36 = sbr.rel (0) target = $region17
    $region16: #{tpu_custom_call.1} parent=1 // pred_region
      %37 = dma.done [#allocation3], 128
    $region17: #{tpu_custom_call.1} parent=1 // pred_fallthru
      _
    // Predicated region
    $region18: #{tpu_custom_call.1} parent=1 // pred_check
      _
    $region19: #{tpu_custom_call.1} parent=1 // pred_check_branch
      %39 = sbr.rel (0) target = $region21
    $region20: #{tpu_custom_call.1} parent=1 // pred_region
      %40 = dma.done [#allocation6], 4800
    $region21: #{tpu_custom_call.1} parent=1 // pred_fallthru
      _
    %v42 = vld [vmem:[#allocation2] sm:$0xff]
    %v43 = vld [vmem:[#allocation5] sm:$0xff]
    %v44 = vld [vmem:[#allocation5 + $0x8] sm:$0xf]
    %v45 = vld [vmem:[#allocation5 + $0xc] sm:$0xff]
    %v46 = vld [vmem:[#allocation5 + $0x14] sm:$0xf]
    %v47 = vld [vmem:[#allocation5 + $0x18] sm:$0xff]
    %v48 = vld [vmem:[#allocation5 + $0x20] sm:$0xf]
    %v49 = vld [vmem:[#allocation5 + $0x24] sm:$0xff]
    %v50 = vld [vmem:[#allocation5 + $0x2c] sm:$0xf]
    %v51 = vld [vmem:[#allocation5 + $0x30] sm:$0xff]
    %v52 = vld [vmem:[#allocation5 + $0x38] sm:$0xf]
    %v53 = vld [vmem:[#allocation5 + $0x3c] sm:$0xff]
    %v54 = vld [vmem:[#allocation5 + $0x44] sm:$0xf]
    %v55 = vld [vmem:[#allocation5 + $0x48] sm:$0xff]
    %v56 = vld [vmem:[#allocation5 + $0x50] sm:$0xf]
    %v57 = vld [vmem:[#allocation5 + $0x54] sm:$0xff]
    %v58 = vld [vmem:[#allocation5 + $0x5c] sm:$0xf]
    %v59 = vld [vmem:[#allocation5 + $0x60] sm:$0xff]
    %v60 = vld [vmem:[#allocation5 + $0x68] sm:$0xf]
    %v61 = vld [vmem:[#allocation5 + $0x6c] sm:$0xff]
    %v62 = vld [vmem:[#allocation5 + $0x74] sm:$0xf]
    %v63 = vld [vmem:[#allocation5 + $0x78] sm:$0xff]
    %v64 = vld [vmem:[#allocation5 + $0x80] sm:$0xf]
    %v65 = vld [vmem:[#allocation5 + $0x84] sm:$0xff]
    %v66 = vld [vmem:[#allocation5 + $0x8c] sm:$0xf]
    %v67 = vld [vmem:[#allocation5 + $0x90] sm:$0xff]
    %v68 = vld [vmem:[#allocation5 + $0x98] sm:$0xf]
    %v69 = vld [vmem:[#allocation5 + $0x9c] sm:$0xff]
    %v70 = vld [vmem:[#allocation5 + $0xa4] sm:$0xf]
    %v71 = vld [vmem:[#allocation5 + $0xa8] sm:$0xff]
    %v72 = vld [vmem:[#allocation5 + $0xb0] sm:$0xf]
    %v73 = vld [vmem:[#allocation5 + $0xb4] sm:$0xff]
    %v74 = vld [vmem:[#allocation5 + $0xbc] sm:$0xf]
    %v75 = vld [vmem:[#allocation5 + $0xc0] sm:$0xff]
    %v76 = vld [vmem:[#allocation5 + $0xc8] sm:$0xf]
    %v77 = vld [vmem:[#allocation5 + $0xcc] sm:$0xff]
    %v78 = vld [vmem:[#allocation5 + $0xd4] sm:$0xf]
    %v79 = vld [vmem:[#allocation5 + $0xd8] sm:$0xff]
    %v80 = vld [vmem:[#allocation5 + $0xe0] sm:$0xf]
    %v81 = vld [vmem:[#allocation5 + $0xe4] sm:$0xff]
    %v82 = vld [vmem:[#allocation5 + $0xec] sm:$0xf]
    %v83 = vld [vmem:[#allocation5 + $0xf0] sm:$0xff]
    %v84 = vld [vmem:[#allocation5 + $0xf8] sm:$0xf]
    %v85 = vld [vmem:[#allocation5 + $0xfc] sm:$0xff]
    %v86 = vld [vmem:[#allocation5 + $0x104] sm:$0xf]
    %v87 = vld [vmem:[#allocation5 + $0x108] sm:$0xff]
    %v88 = vld [vmem:[#allocation5 + $0x110] sm:$0xf]
    %v89 = vld [vmem:[#allocation5 + $0x114] sm:$0xff]
    %v90 = vld [vmem:[#allocation5 + $0x11c] sm:$0xf]
    %v91 = vld [vmem:[#allocation5 + $0x120] sm:$0x33]
    %v92 = vld [vmem:[#allocation5 + $0x128] sm:$0x3]
    %v93 = vld [vmem:[%s2] sm:$0x7]
    %v95 = vlaneseq
    %v96 = vshrl.u32 %v95, 7
    %v97 = vsub.s32 0, %v96
    %v98 = vrot.slane %v93, %v97
    %v99 = vlaneseq
    %v100 = vshrl.u32 %v99, 7
    %v101 = vsub.s32 1, %v100
    %v102 = vrot.slane %v93, %v101
    %v103 = vlaneseq
    %v104 = vshrl.u32 %v103, 7
    %v105 = vsub.s32 2, %v104
    %v106 = vrot.slane %v93, %v105
    %v111 = vunpack.c.l.b16 %v42
    %v112 = vunpack.c.h.b16 %v42
    %v113 = vpack.c.b16 %v111, %v111
    %v114 = vpack.c.b16 %v112, %v112
    %v166 = vunpack.c.l.b16 %v43
    %v167 = vunpack.c.h.b16 %v43
    %v168 = vunpack.c.l.b16 %v44
    %v169 = vunpack.c.l.b16 %v45
    %v170 = vunpack.c.h.b16 %v45
    %v171 = vunpack.c.l.b16 %v46
    %v172 = vunpack.c.l.b16 %v47
    %v173 = vunpack.c.h.b16 %v47
    %v174 = vunpack.c.l.b16 %v48
    %v175 = vunpack.c.l.b16 %v49
    %v176 = vunpack.c.h.b16 %v49
    %v177 = vunpack.c.l.b16 %v50
    %v178 = vunpack.c.l.b16 %v51
    %v179 = vunpack.c.h.b16 %v51
    %v180 = vunpack.c.l.b16 %v52
    %v181 = vunpack.c.l.b16 %v53
    %v182 = vunpack.c.h.b16 %v53
    %v183 = vunpack.c.l.b16 %v54
    %v184 = vunpack.c.l.b16 %v55
    %v185 = vunpack.c.h.b16 %v55
    %v186 = vunpack.c.l.b16 %v56
    %v187 = vunpack.c.l.b16 %v57
    %v188 = vunpack.c.h.b16 %v57
    %v189 = vunpack.c.l.b16 %v58
    %v190 = vunpack.c.l.b16 %v59
    %v191 = vunpack.c.h.b16 %v59
    %v192 = vunpack.c.l.b16 %v60
    %v193 = vunpack.c.l.b16 %v61
    %v194 = vunpack.c.h.b16 %v61
    %v195 = vunpack.c.l.b16 %v62
    %v196 = vunpack.c.l.b16 %v63
    %v197 = vunpack.c.h.b16 %v63
    %v198 = vunpack.c.l.b16 %v64
    %v199 = vunpack.c.l.b16 %v65
    %v200 = vunpack.c.h.b16 %v65
    %v201 = vunpack.c.l.b16 %v66
    %v202 = vunpack.c.l.b16 %v67
    %v203 = vunpack.c.h.b16 %v67
    %v204 = vunpack.c.l.b16 %v68
    %v205 = vunpack.c.l.b16 %v69
    %v206 = vunpack.c.h.b16 %v69
    %v207 = vunpack.c.l.b16 %v70
    %v208 = vunpack.c.l.b16 %v71
    %v209 = vunpack.c.h.b16 %v71
    %v210 = vunpack.c.l.b16 %v72
    %v211 = vunpack.c.l.b16 %v73
    %v212 = vunpack.c.h.b16 %v73
    %v213 = vunpack.c.l.b16 %v74
    %v214 = vunpack.c.l.b16 %v75
    %v215 = vunpack.c.h.b16 %v75
    %v216 = vunpack.c.l.b16 %v76
    %v217 = vunpack.c.l.b16 %v77
    %v218 = vunpack.c.h.b16 %v77
    %v219 = vunpack.c.l.b16 %v78
    %v220 = vunpack.c.l.b16 %v79
    %v221 = vunpack.c.h.b16 %v79
    %v222 = vunpack.c.l.b16 %v80
    %v223 = vunpack.c.l.b16 %v81
    %v224 = vunpack.c.h.b16 %v81
    %v225 = vunpack.c.l.b16 %v82
    %v226 = vunpack.c.l.b16 %v83
    %v227 = vunpack.c.h.b16 %v83
    %v228 = vunpack.c.l.b16 %v84
    %v229 = vunpack.c.l.b16 %v85
    %v230 = vunpack.c.h.b16 %v85
    %v231 = vunpack.c.l.b16 %v86
    %v232 = vunpack.c.l.b16 %v87
    %v233 = vunpack.c.h.b16 %v87
    %v234 = vunpack.c.l.b16 %v88
    %v235 = vunpack.c.l.b16 %v89
    %v236 = vunpack.c.h.b16 %v89
    %v237 = vunpack.c.l.b16 %v90
    %v238 = vunpack.c.l.b16 %v91
    %v239 = vunpack.c.h.b16 %v91
    %v240 = vunpack.c.l.b16 %v92
    %v241 = vpack.c.b16 %v169, %v166
    %v242 = vpack.c.b16 %v170, %v167
    %v243 = vpack.c.b16 %v171, %v168
    %v244 = vpack.c.b16 %v175, %v172
    %v245 = vpack.c.b16 %v176, %v173
    %v246 = vpack.c.b16 %v177, %v174
    %v247 = vpack.c.b16 %v181, %v178
    %v248 = vpack.c.b16 %v182, %v179
    %v249 = vpack.c.b16 %v183, %v180
    %v250 = vpack.c.b16 %v187, %v184
    %v251 = vpack.c.b16 %v188, %v185
    %v252 = vpack.c.b16 %v189, %v186
    %v253 = vpack.c.b16 %v193, %v190
    %v254 = vpack.c.b16 %v194, %v191
    %v255 = vpack.c.b16 %v195, %v192
    %v256 = vpack.c.b16 %v199, %v196
    %v257 = vpack.c.b16 %v200, %v197
    %v258 = vpack.c.b16 %v201, %v198
    %v259 = vpack.c.b16 %v205, %v202
    %v260 = vpack.c.b16 %v206, %v203
    %v261 = vpack.c.b16 %v207, %v204
    %v262 = vpack.c.b16 %v211, %v208
    %v263 = vpack.c.b16 %v212, %v209
    %v264 = vpack.c.b16 %v213, %v210
    %v265 = vpack.c.b16 %v217, %v214
    %v266 = vpack.c.b16 %v218, %v215
    %v267 = vpack.c.b16 %v219, %v216
    %v268 = vpack.c.b16 %v223, %v220
    %v269 = vpack.c.b16 %v224, %v221
    %v270 = vpack.c.b16 %v225, %v222
    %v271 = vpack.c.b16 %v229, %v226
    %v272 = vpack.c.b16 %v230, %v227
    %v273 = vpack.c.b16 %v231, %v228
    %v274 = vpack.c.b16 %v235, %v232
    %v275 = vpack.c.b16 %v236, %v233
    %v276 = vpack.c.b16 %v237, %v234
    %v277 = vpack.c.b16 %v238, %v238
    %v278 = vpack.c.b16 %v239, %v239
    %v279 = vpack.c.b16 %v240, %v240
    %vm316 = vcmask 556032
    %v318 = vsel %vm316, %v114, 0
    %vm320 = vcmask 1041408
    %v322 = vsel %vm320, %v277, 0
    %v325 = vsel %vm320, %v278, 0
    %v328 = vsel %vm320, %v279, 0
    %330 = vmatprep.subr.bf16.mxu0 %v242
    %331 = vmatpush1.bf16.msra.mxu0 %v241
    %332 = vmatprep.subr.bf16.mxu0 %v245
    %333 = vmatpush1.bf16.msra.mxu0 %v244
    %334 = vmatprep.subr.bf16.mxu0 %v248
    %335 = vmatpush1.bf16.msra.mxu0 %v247
    %336 = vmatprep.subr.bf16.mxu0 %v251
    %337 = vmatpush1.bf16.msra.mxu0 %v250
    %338 = vmatprep.subr.bf16.mxu0 %v254
    %339 = vmatpush1.bf16.msra.mxu0 %v253
    %340 = vmatprep.subr.bf16.mxu0 %v257
    %341 = vmatpush1.bf16.msra.mxu0 %v256
    %342 = vmatprep.subr.bf16.mxu0 %v260
    %343 = vmatpush1.bf16.msra.mxu0 %v259
    %344 = vmatprep.subr.bf16.mxu0 %v263
    %345 = vmatpush1.bf16.msra.mxu0 %v262
    %346 = vmatprep.subr.bf16.mxu0 %v266
    %347 = vmatpush1.bf16.msra.mxu0 %v265
    %348 = vmatprep.subr.bf16.mxu0 %v269
    %349 = vmatpush1.bf16.msra.mxu0 %v268
    %350 = vmatprep.subr.bf16.mxu0 %v272
    %351 = vmatpush1.bf16.msra.mxu0 %v271
    %352 = vmatprep.subr.bf16.mxu0 %v275
    %353 = vmatpush1.bf16.msra.mxu0 %v274
    %354 = vmatprep.subr.bf16.mxu0 %v325
    %355 = vmatpush1.bf16.msra.mxu0 %v322
    %356 = vmatprep.subr.bf16.mxu0 0
    %357 = vmatpush1.bf16.msra.mxu0 0
    %358 = vmatprep.subr.bf16.mxu0 0
    %359 = vmatpush1.bf16.msra.mxu0 0
    %360 = vmatprep.subr.bf16.mxu0 0
    %361 = vmatpush1.bf16.msra.mxu0 0
    %362 = vmatprep.mubr.bf16.mxu0 %v318
    %363 = vmatmul.mubr.bf16.gmra.mrb[0].mxu0 %v113
    %v364 = vpop.f32.mrb[0].mxu0
    %v365 = vadd.f32 %v98, %v364
    %v366 = vpop.f32.mrb[0].mxu0
    %v367 = vadd.f32 %v102, %v366
    %v368 = vpop.f32.mrb[0].mxu0
    %v369 = vpop.f32.mrb[0].mxu0
    %370 = vdwg.mxu0
    %371 = vmatprep.subr.bf16.mxu0 0
    %372 = vmatpush1.bf16.msra.mxu0 %v243
    %373 = vmatprep.subr.bf16.mxu0 0
    %374 = vmatpush1.bf16.msra.mxu0 %v246
    %375 = vmatprep.subr.bf16.mxu0 0
    %376 = vmatpush1.bf16.msra.mxu0 %v249
    %377 = vmatprep.subr.bf16.mxu0 0
    %378 = vmatpush1.bf16.msra.mxu0 %v252
    %379 = vmatprep.subr.bf16.mxu0 0
    %380 = vmatpush1.bf16.msra.mxu0 %v255
    %381 = vmatprep.subr.bf16.mxu0 0
    %382 = vmatpush1.bf16.msra.mxu0 %v258
    %383 = vmatprep.subr.bf16.mxu0 0
    %384 = vmatpush1.bf16.msra.mxu0 %v261
    %385 = vmatprep.subr.bf16.mxu0 0
    %386 = vmatpush1.bf16.msra.mxu0 %v264
    %387 = vmatprep.subr.bf16.mxu0 0
    %388 = vmatpush1.bf16.msra.mxu0 %v267
    %389 = vmatprep.subr.bf16.mxu0 0
    %390 = vmatpush1.bf16.msra.mxu0 %v270
    %391 = vmatprep.subr.bf16.mxu0 0
    %392 = vmatpush1.bf16.msra.mxu0 %v273
    %393 = vmatprep.subr.bf16.mxu0 0
    %394 = vmatpush1.bf16.msra.mxu0 %v276
    %395 = vmatprep.subr.bf16.mxu0 0
    %396 = vmatpush1.bf16.msra.mxu0 %v328
    %397 = vmatprep.subr.bf16.mxu0 0
    %398 = vmatpush1.bf16.msra.mxu0 0
    %399 = vmatprep.subr.bf16.mxu0 0
    %400 = vmatpush1.bf16.msra.mxu0 0
    %401 = vmatprep.subr.bf16.mxu0 0
    %402 = vmatpush1.bf16.msra.mxu0 0
    %403 = vmatprep.mubr.bf16.mxu0 %v318
    %404 = vmatmul.mubr.bf16.gmra.mrb[0].mxu0 %v113
    %v405 = vpop.f32.mrb[0].mxu0
    %v406 = vadd.f32 %v106, %v405
    %v407 = vpop.f32.mrb[0].mxu0
    %v408 = vpop.f32.mrb[0].mxu0
    %v409 = vpop.f32.mrb[0].mxu0
    %410 = vdwg.mxu0
    %411 = vst [vmem:[#allocation7] sm:$0xff] %v365
    %412 = vst [vmem:[#allocation7 + $0x8] sm:$0xff] %v367
    %413 = vst [vmem:[#allocation7 + $0x10] sm:$0xff] %v406
    // Predicated region
    $region22: #{tpu_custom_call.1} parent=1 // pred_check
      _
    $region23: #{tpu_custom_call.1} parent=1 // pred_check_branch
      %415 = sbr.rel (0) target = $region25
    $region24: #{tpu_custom_call.1} parent=1 // pred_region
      %s417 = ssub.s32 384, 384
      %418 = vsyncadd [#allocation4], %s417
      %s420 = sshll.u32 [#allocation7], 4
      %s421 = int_to_ptr.vmem [resolvable:$true] %s420
      %423 = dma.vmem_to_hbm [thread:$0]  %s421, 384, %s3, [#allocation4]
    $region25: #{tpu_custom_call.1} parent=1 // pred_fallthru
      _
    // Predicated region
    $region26: #{tpu_custom_call.1} parent=1 // pred_check
      _
    $region27: #{tpu_custom_call.1} parent=1 // pred_check_branch
      %425 = sbr.rel (0) target = $region29
    $region28: #{tpu_custom_call.1} parent=1 // pred_region
      %426 = dma.done [#allocation4], 384
    $region29: #{tpu_custom_call.1} parent=1 // pred_fallthru
      _
    %427 = vsyncpa [#allocation3], 1
    %428 = vsyncpa [#allocation6], 1
    %429 = vsyncpa [#allocation4], 1

</llo_original>
